<compile_context>
chip_gen: v6e
topology: v6e:2x2x1
jax: 0.10.0
libtpu: 0.0.40
codegen_flags: <defaults>
</compile_context>

<pallas_src>
import math
import jax
import jax.numpy as jnp
from jax.experimental import pallas as pl
from jax.experimental.pallas import tpu as pltpu


def _gelu_exact(x):
    # PyTorch nn.GELU default = exact erf formulation.
    return 0.5 * x * (1.0 + jax.lax.erf(x * (1.0 / math.sqrt(2.0))))


def _gelu_tanh(x):
    # EUP-friendly tanh approximation (opt-in; not bit-identical to erf GELU).
    c = math.sqrt(2.0 / math.pi)
    return 0.5 * x * (1.0 + jnp.tanh(c * (x + 0.044715 * x * x * x)))


def _make_rescnn_kernel(C_in, C_out, L, K, Bt, compute_dtype, pad1, pad2, use_tanh_gelu):
    pad = K // 2
    compute_dtype = jnp.dtype(compute_dtype)
    gelu = _gelu_tanh if use_tanh_gelu else _gelu_exact

    def kernel(x_ref, s1_ref, sh1_ref, w1_ref, b1_ref, w2_ref, b2_ref, o_ref):
        # ---- hoisted: per-tap lane masks, shared by both convs and all Bt samples ----
        lane = jax.lax.broadcasted_iota(jnp.int32, (1, L), 1)
        masks = []
        for k in range(K):
            if k < pad:
                masks.append(lane >= (pad - k))        # left taps: zero first (pad-k) lanes
            elif k > pad:
                masks.append(lane < L - (k - pad))     # right taps: zero last (k-pad) lanes
            else:
                masks.append(None)                     # centre tap: no select needed

        s1, sh1 = s1_ref[...], sh1_ref[...]
        w1, b1 = w1_ref[...], b1_ref[...]
        w2, b2 = w2_ref[...], b2_ref[...]

        def conv(a, w, b, n_pad):
            # a: (C, L) f32; w: (C_out', K*C [+ n_pad]) compute_dtype; b: (C_out', 1) f32.
            taps = []
            for k in range(K):                         # K tiny & static -> trace-time unroll
                shift = (pad - k) % L
                xk = pltpu.roll(a, shift=shift, axis=1) if shift != 0 else a
                if masks[k] is not None:
                    xk = jnp.where(masks[k], xk, 0.0)
                taps.append(xk)
            if n_pad:                                  # keep MXU contraction dim tile-aligned
                taps.append(jnp.zeros((n_pad, L), a.dtype))
            xcol = jnp.concatenate(taps, axis=0)       # (K*C [+ n_pad], L), f32
            if xcol.dtype != compute_dtype:
                xcol = xcol.astype(compute_dtype)      # single whole-slab cast (bf16 path only)
            return jnp.dot(w, xcol, preferred_element_type=jnp.float32) + b

        for bi in range(Bt):                           # static unroll over samples in block
            x = x_ref[bi].astype(jnp.float32)          # (C_in, L)
            a = gelu(x * s1 + sh1)                     # BN1 (folded) + GELU; Dropout = identity
            h = gelu(conv(a, w1, b1, pad1))            # Conv1 (BN2 pre-folded) + GELU
            o_ref[bi] = conv(h, w2, b2, pad2).astype(o_ref.dtype)   # Conv2

    return kernel


def rescnn_forward(x, params, *, kernel_size, stride, batch_block=None, use_tanh_gelu=False):
    """x: (N, C_in, L) float32.  params: dict of folded/fused weights (see init_params)."""
    N, C_in, L = x.shape
    K = kernel_size
    assert K % 2 == 1, "roll+mask 'same' padding assumes an odd kernel size"
    if stride != 1:
        # TODO(synk): stride > 1 needs a strided im2col gather path (ResCNN here uses stride=1)
        raise NotImplementedError("Pallas ResCNN kernel implements stride=1 only")

    C_out = params["w1f"].shape[0]
    compute_dtype = params["w1f"].dtype
    pad1 = params["w1f"].shape[1] - K * C_in           # zero-padded contraction rows (bf16 path)
    pad2 = params["w2f"].shape[1] - K * C_out
    assert pad1 >= 0 and pad2 >= 0, (pad1, pad2)

    if batch_block is None:
        # >= 2 grid steps whenever N >= 2 (v7x: batch axis marked "parallel" shards across the
        # two TensorCores), while packing a few samples per step to amortize the ~0.35us/step
        # grid overhead.  Per-step working set stays far below v7x's 64 MiB VMEM at these sizes.
        Bt = min(max(1, N // 2), max(1, 4096 // L))
        while N % Bt:
            Bt -= 1
    else:
        Bt = batch_block
    assert N % Bt == 0, (N, Bt)

    kern = _make_rescnn_kernel(C_in, C_out, L, K, Bt, compute_dtype, pad1, pad2, use_tanh_gelu)
    const = lambda shape: pl.BlockSpec(shape, lambda g: tuple(0 for _ in shape))

    return pl.pallas_call(
        kern,
        out_shape=jax.ShapeDtypeStruct((N, C_out, L), x.dtype),
        grid_spec=pltpu.PrefetchScalarGridSpec(
            num_scalar_prefetch=0,
            grid=(N // Bt,),
            in_specs=[
                pl.BlockSpec((Bt, C_in, L), lambda g: (g, 0, 0)),   # activations (no transpose)
                const((C_in, 1)),                                   # bn1 scale
                const((C_in, 1)),                                   # bn1 shift
                const((C_out, params["w1f"].shape[1])),             # conv1 weight (BN2-fused, im2col)
                const((C_out, 1)),                                  # conv1 bias   (BN2-fused)
                const((C_out, params["w2f"].shape[1])),             # conv2 weight (im2col)
                const((C_out, 1)),                                  # conv2 bias
            ],
            out_specs=pl.BlockSpec((Bt, C_out, L), lambda g: (g, 0, 0)),
        ),
        compiler_params=pltpu.CompilerParams(dimension_semantics=("parallel",)),
    )(x, params["s1"], params["sh1"], params["w1f"], params["b1f"],
      params["w2f"], params["b2"])


def init_params(key, in_channels, out_channels, kernel_size, eps=1e-5,
                compute_dtype=jnp.float32):
    ks = jax.random.split(key, 10)
    K = kernel_size
    # BatchNorm1d(in_channels): gamma, beta, running_mean, running_var
    g1 = 1.0 + 0.1 * jax.random.normal(ks[0], (in_channels,), jnp.float32)
    be1 = 0.1 * jax.random.normal(ks[1], (in_channels,), jnp.float32)
    rm1 = 0.1 * jax.random.normal(ks[2], (in_channels,), jnp.float32)
    rv1 = jnp.abs(jax.random.normal(ks[3], (in_channels,), jnp.float32)) + 0.5
    # Conv1d(in -> out), PyTorch (O, I, K) layout
    w1 = 0.1 * jax.random.normal(ks[4], (out_channels, in_channels, K), jnp.float32)
    b1 = 0.1 * jax.random.normal(ks[5], (out_channels,), jnp.float32)
    # BatchNorm1d(out_channels)
    g2 = 1.0 + 0.1 * jax.random.normal(ks[6], (out_channels,), jnp.float32)
    be2 = 0.1 * jax.random.normal(ks[7], (out_channels,), jnp.float32)
    rm2 = 0.1 * jax.random.normal(ks[8], (out_channels,), jnp.float32)
    rv2 = jnp.abs(jax.random.normal(ks[9], (out_channels,), jnp.float32)) + 0.5
    # Conv1d(out -> out)
    k2a, k2b = jax.random.split(ks[0])
    w2 = 0.1 * jax.random.normal(k2a, (out_channels, out_channels, K), jnp.float32)
    b2 = 0.1 * jax.random.normal(k2b, (out_channels,), jnp.float32)

    # Fold BN (eval mode) into per-channel scale/shift.
    s1 = g1 / jnp.sqrt(rv1 + eps)
    sh1 = be1 - rm1 * s1
    s2 = g2 / jnp.sqrt(rv2 + eps)
    sh2 = be2 - rm2 * s2

    # im2col weight layout w_f[o, k*C + c] = w[o, c, k]; the contraction dim is zero-padded
    # to a multiple of the sublane pack (8 for f32, 16 for bf16) so the MXU operand is clean.
    mult = 16 if jnp.dtype(compute_dtype).itemsize == 2 else 8

    def im2col(w, row_scale=None):
        o, c, k = w.shape
        wf = jnp.transpose(w, (0, 2, 1)).reshape(o, k * c)
        if row_scale is not None:
            wf = row_scale[:, None] * wf
        n_pad = (-wf.shape[1]) % mult
        if n_pad:
            wf = jnp.pad(wf, ((0, 0), (0, n_pad)))
        return wf.astype(compute_dtype)

    w1f = im2col(w1, row_scale=s2)            # BN2 fused into conv1's weights
    b1f = (s2 * b1 + sh2)[:, None]            # ... and into conv1's bias
    w2f = im2col(w2)

    params = {"s1": s1[:, None], "sh1": sh1[:, None],
              "w1f": w1f, "b1f": b1f, "w2f": w2f, "b2": b2[:, None]}
    raw = {"w1": w1, "b1": b1, "w2": w2, "b2": b2,
           "s1": s1, "sh1": sh1, "s2": s2, "sh2": sh2}
    return params, raw


def reference_forward(x, raw, *, kernel_size, stride):
    pad = kernel_size // 2
    dn = ("NCH", "OIH", "NCH")
    a = x * raw["s1"][None, :, None] + raw["sh1"][None, :, None]
    a = _gelu_exact(a)
    h = jax.lax.conv_general_dilated(a, raw["w1"], (stride,), [(pad, pad)],
                                     dimension_numbers=dn)
    h = h + raw["b1"][None, :, None]
    h = h * raw["s2"][None, :, None] + raw["sh2"][None, :, None]
    h = _gelu_exact(h)
    o = jax.lax.conv_general_dilated(h, raw["w2"], (stride,), [(pad, pad)],
                                     dimension_numbers=dn)
    o = o + raw["b2"][None, :, None]
    return o


if __name__ == "__main__":
    N, C_in, C_out, L = 2, 8, 16, 128
    K, STRIDE = 3, 1          # kernel=3, stride=1, dropout (eval => identity)

    key = jax.random.PRNGKey(0)
    kx, kp = jax.random.split(key)
    x = jax.random.normal(kx, (N, C_in, L), jnp.float32)
    params, raw = init_params(kp, C_in, C_out, K)      # f32 operands by default at these shapes

    out = rescnn_forward(x, params, kernel_size=K, stride=STRIDE)
    out = jax.block_until_ready(out)

    ref = reference_forward(x, raw, kernel_size=K, stride=STRIDE)
    assert out.shape == ref.shape, (out.shape, ref.shape)
    err = float(jnp.max(jnp.abs(out - ref)))
    assert err < 2e-3, err    # f32 operands, f32 accumulation

    print("KERNEL_OK")
</pallas_src>

<mosaic_0001>
module attributes {stable_mosaic.version = 11 : i64} {
  func.func @kernel(%arg0: i32, %arg1: memref<1x8x128xf32, #tpu.memory_space<vmem>>, %arg2: memref<8x1xf32, #tpu.memory_space<vmem>>, %arg3: memref<8x1xf32, #tpu.memory_space<vmem>>, %arg4: memref<16x24xf32, #tpu.memory_space<vmem>>, %arg5: memref<16x1xf32, #tpu.memory_space<vmem>>, %arg6: memref<16x48xf32, #tpu.memory_space<vmem>>, %arg7: memref<16x1xf32, #tpu.memory_space<vmem>>, %arg8: memref<1x16x128xf32, #tpu.memory_space<vmem>>) attributes {dimension_semantics = [#tpu.dimension_semantics<parallel>], iteration_bounds = array<i64: 2>, scalar_prefetch = 0 : i64, scratch_operands = 0 : i64, tpu.core_type = #tpu.core_type<tc>, window_params = [{transform_indices = @transform_0, window_bounds = array<i64: 1, 8, 128>}, {pipeline_mode = #tpu.pipeline_mode<synchronous>, transform_indices = @transform_1, window_bounds = array<i64: 8, 1>}, {pipeline_mode = #tpu.pipeline_mode<synchronous>, transform_indices = @transform_2, window_bounds = array<i64: 8, 1>}, {pipeline_mode = #tpu.pipeline_mode<synchronous>, transform_indices = @transform_3, window_bounds = array<i64: 16, 24>}, {pipeline_mode = #tpu.pipeline_mode<synchronous>, transform_indices = @transform_4, window_bounds = array<i64: 16, 1>}, {pipeline_mode = #tpu.pipeline_mode<synchronous>, transform_indices = @transform_5, window_bounds = array<i64: 16, 48>}, {pipeline_mode = #tpu.pipeline_mode<synchronous>, transform_indices = @transform_6, window_bounds = array<i64: 16, 1>}, {transform_indices = @transform_7, window_bounds = array<i64: 1, 16, 128>}]} {
    %0 = tpu.iota {dimensions = array<i32: 1>} : vector<1x128xi32>
    %c1_i32 = arith.constant 1 : i32
    %1 = vector.broadcast %c1_i32 : i32 to vector<1x128xi32>
    %2 = arith.cmpi sge, %0, %1 : vector<1x128xi32>
    %c127_i32 = arith.constant 127 : i32
    %3 = vector.broadcast %c127_i32 : i32 to vector<1x128xi32>
    %4 = arith.cmpi slt, %0, %3 : vector<1x128xi32>
    %c0 = arith.constant 0 : index
    %c0_0 = arith.constant 0 : index
    %5 = vector.load %arg2[%c0, %c0_0] : memref<8x1xf32, #tpu.memory_space<vmem>>, vector<8x1xf32>
    %c0_1 = arith.constant 0 : index
    %c0_2 = arith.constant 0 : index
    %6 = vector.load %arg3[%c0_1, %c0_2] : memref<8x1xf32, #tpu.memory_space<vmem>>, vector<8x1xf32>
    %c0_3 = arith.constant 0 : index
    %c0_4 = arith.constant 0 : index
    %7 = vector.load %arg4[%c0_3, %c0_4] : memref<16x24xf32, #tpu.memory_space<vmem>>, vector<16x24xf32>
    %c0_5 = arith.constant 0 : index
    %c0_6 = arith.constant 0 : index
    %8 = vector.load %arg5[%c0_5, %c0_6] : memref<16x1xf32, #tpu.memory_space<vmem>>, vector<16x1xf32>
    %c0_7 = arith.constant 0 : index
    %c0_8 = arith.constant 0 : index
    %9 = vector.load %arg6[%c0_7, %c0_8] : memref<16x48xf32, #tpu.memory_space<vmem>>, vector<16x48xf32>
    %c0_9 = arith.constant 0 : index
    %c0_10 = arith.constant 0 : index
    %10 = vector.load %arg7[%c0_9, %c0_10] : memref<16x1xf32, #tpu.memory_space<vmem>>, vector<16x1xf32>
    %c0_11 = arith.constant 0 : index
    %c0_12 = arith.constant 0 : index
    %c0_13 = arith.constant 0 : index
    %11 = vector.load %arg1[%c0_11, %c0_12, %c0_13] : memref<1x8x128xf32, #tpu.memory_space<vmem>>, vector<1x8x128xf32>
    %12 = vector.shape_cast %11 : vector<1x8x128xf32> to vector<8x128xf32>
    %13 = vector.broadcast %5 : vector<8x1xf32> to vector<8x128xf32>
    %14 = arith.mulf %12, %13 : vector<8x128xf32>
    %15 = vector.broadcast %6 : vector<8x1xf32> to vector<8x128xf32>
    %16 = arith.addf %14, %15 : vector<8x128xf32>
    %cst = arith.constant 5.000000e-01 : f32
    %17 = vector.broadcast %cst : f32 to vector<8x128xf32>
    %18 = arith.mulf %17, %16 : vector<8x128xf32>
    %cst_14 = arith.constant 0.707106769 : f32
    %19 = vector.broadcast %cst_14 : f32 to vector<8x128xf32>
    %20 = arith.mulf %16, %19 : vector<8x128xf32>
    %21 = math.erf %20 : vector<8x128xf32>
    %cst_15 = arith.constant 1.000000e+00 : f32
    %22 = vector.broadcast %cst_15 : f32 to vector<8x128xf32>
    %23 = arith.addf %22, %21 : vector<8x128xf32>
    %24 = arith.mulf %18, %23 : vector<8x128xf32>
    %c1_i32_16 = arith.constant 1 : i32
    %25 = tpu.dynamic_rotate %24 by %c1_i32_16 dim 1 : vector<8x128xf32>, i32 -> vector<8x128xf32>
    %cst_17 = arith.constant 0.000000e+00 : f32
    %26 = vector.shape_cast %2 : vector<1x128xi1> to vector<1x128xi1>
    %27 = vector.broadcast %26 : vector<1x128xi1> to vector<8x128xi1>
    %28 = vector.broadcast %cst_17 : f32 to vector<8x128xf32>
    %29 = arith.select %27, %25, %28 : vector<8x128xi1>, vector<8x128xf32>
    %c127_i32_18 = arith.constant 127 : i32
    %30 = tpu.dynamic_rotate %24 by %c127_i32_18 dim 1 : vector<8x128xf32>, i32 -> vector<8x128xf32>
    %cst_19 = arith.constant 0.000000e+00 : f32
    %31 = vector.shape_cast %4 : vector<1x128xi1> to vector<1x128xi1>
    %32 = vector.broadcast %31 : vector<1x128xi1> to vector<8x128xi1>
    %33 = vector.broadcast %cst_19 : f32 to vector<8x128xf32>
    %34 = arith.select %32, %30, %33 : vector<8x128xi1>, vector<8x128xf32>
    %35 = tpu.concatenate %29, %24, %34 in 0 : vector<8x128xf32>, vector<8x128xf32>, vector<8x128xf32> -> vector<24x128xf32>
    %cst_20 = arith.constant dense<0.000000e+00> : vector<16x128xf32>
    %36 = tpu.matmul %7, %35, %cst_20 {dimension_numbers = #tpu.dot_dimension_numbers<[1], [0], [0], [1], [0, 0, 1, 1], [], []>} : vector<16x24xf32>, vector<24x128xf32>, vector<16x128xf32> -> vector<16x128xf32>
    %37 = vector.broadcast %8 : vector<16x1xf32> to vector<16x128xf32>
    %38 = arith.addf %36, %37 : vector<16x128xf32>
    %cst_21 = arith.constant 5.000000e-01 : f32
    %39 = vector.broadcast %cst_21 : f32 to vector<16x128xf32>
    %40 = arith.mulf %39, %38 : vector<16x128xf32>
    %cst_22 = arith.constant 0.707106769 : f32
    %41 = vector.broadcast %cst_22 : f32 to vector<16x128xf32>
    %42 = arith.mulf %38, %41 : vector<16x128xf32>
    %43 = math.erf %42 : vector<16x128xf32>
    %cst_23 = arith.constant 1.000000e+00 : f32
    %44 = vector.broadcast %cst_23 : f32 to vector<16x128xf32>
    %45 = arith.addf %44, %43 : vector<16x128xf32>
    %46 = arith.mulf %40, %45 : vector<16x128xf32>
    %c1_i32_24 = arith.constant 1 : i32
    %47 = tpu.dynamic_rotate %46 by %c1_i32_24 dim 1 : vector<16x128xf32>, i32 -> vector<16x128xf32>
    %cst_25 = arith.constant 0.000000e+00 : f32
    %48 = vector.shape_cast %2 : vector<1x128xi1> to vector<1x128xi1>
    %49 = vector.broadcast %48 : vector<1x128xi1> to vector<16x128xi1>
    %50 = vector.broadcast %cst_25 : f32 to vector<16x128xf32>
    %51 = arith.select %49, %47, %50 : vector<16x128xi1>, vector<16x128xf32>
    %c127_i32_26 = arith.constant 127 : i32
    %52 = tpu.dynamic_rotate %46 by %c127_i32_26 dim 1 : vector<16x128xf32>, i32 -> vector<16x128xf32>
    %cst_27 = arith.constant 0.000000e+00 : f32
    %53 = vector.shape_cast %4 : vector<1x128xi1> to vector<1x128xi1>
    %54 = vector.broadcast %53 : vector<1x128xi1> to vector<16x128xi1>
    %55 = vector.broadcast %cst_27 : f32 to vector<16x128xf32>
    %56 = arith.select %54, %52, %55 : vector<16x128xi1>, vector<16x128xf32>
    %57 = tpu.concatenate %51, %46, %56 in 0 : vector<16x128xf32>, vector<16x128xf32>, vector<16x128xf32> -> vector<48x128xf32>
    %cst_28 = arith.constant dense<0.000000e+00> : vector<16x128xf32>
    %58 = tpu.matmul %9, %57, %cst_28 {dimension_numbers = #tpu.dot_dimension_numbers<[1], [0], [0], [1], [0, 0, 1, 1], [], []>} : vector<16x48xf32>, vector<48x128xf32>, vector<16x128xf32> -> vector<16x128xf32>
    %59 = vector.broadcast %10 : vector<16x1xf32> to vector<16x128xf32>
    %60 = arith.addf %58, %59 : vector<16x128xf32>
    %c0_29 = arith.constant 0 : index
    %c0_30 = arith.constant 0 : index
    %c0_31 = arith.constant 0 : index
    %61 = vector.load %arg8[%c0_29, %c0_30, %c0_31] : memref<1x16x128xf32, #tpu.memory_space<vmem>>, vector<1x16x128xf32>
    %62 = vector.shape_cast %61 : vector<1x16x128xf32> to vector<16x128xf32>
    %63 = vector.shape_cast %60 : vector<16x128xf32> to vector<1x16x128xf32>
    tpu.vector_store %arg8[%c0_29, %c0_30, %c0_31], %63 {strides = array<i32>} : memref<1x16x128xf32, #tpu.memory_space<vmem>>, vector<1x16x128xf32>,
    return
  }
  func.func @transform_0(%arg0: i32) -> (i32, i32, i32) {
    %c0_i32 = arith.constant 0 : i32
    %c0_i32_0 = arith.constant 0 : i32
    %c0_i32_1 = arith.constant 0 : i32
    return %arg0, %c0_i32, %c0_i32_0 : i32, i32, i32
  }
  func.func @transform_1(%arg0: i32) -> (i32, i32) {
    %c0_i32 = arith.constant 0 : i32
    %c0_i32_0 = arith.constant 0 : i32
    %c0_i32_1 = arith.constant 0 : i32
    return %c0_i32, %c0_i32_0 : i32, i32
  }
  func.func @transform_2(%arg0: i32) -> (i32, i32) {
    %c0_i32 = arith.constant 0 : i32
    %c0_i32_0 = arith.constant 0 : i32
    %c0_i32_1 = arith.constant 0 : i32
    return %c0_i32, %c0_i32_0 : i32, i32
  }
  func.func @transform_3(%arg0: i32) -> (i32, i32) {
    %c0_i32 = arith.constant 0 : i32
    %c0_i32_0 = arith.constant 0 : i32
    %c0_i32_1 = arith.constant 0 : i32
    return %c0_i32, %c0_i32_0 : i32, i32
  }
  func.func @transform_4(%arg0: i32) -> (i32, i32) {
    %c0_i32 = arith.constant 0 : i32
    %c0_i32_0 = arith.constant 0 : i32
    %c0_i32_1 = arith.constant 0 : i32
    return %c0_i32, %c0_i32_0 : i32, i32
  }
  func.func @transform_5(%arg0: i32) -> (i32, i32) {
    %c0_i32 = arith.constant 0 : i32
    %c0_i32_0 = arith.constant 0 : i32
    %c0_i32_1 = arith.constant 0 : i32
    return %c0_i32, %c0_i32_0 : i32, i32
  }
  func.func @transform_6(%arg0: i32) -> (i32, i32) {
    %c0_i32 = arith.constant 0 : i32
    %c0_i32_0 = arith.constant 0 : i32
    %c0_i32_1 = arith.constant 0 : i32
    return %c0_i32, %c0_i32_0 : i32, i32
  }
  func.func @transform_7(%arg0: i32) -> (i32, i32, i32) {
    %c0_i32 = arith.constant 0 : i32
    %c0_i32_0 = arith.constant 0 : i32
    %c0_i32_1 = arith.constant 0 : i32
    return %arg0, %c0_i32, %c0_i32_0 : i32, i32, i32
  }
}

</mosaic_0001>

<llo_original>
// kernel: tpu_custom_call.1
$region0: #{tpu_custom_call.1}
  #allocation0 [shape = 'u32[]', space=smem, size = 0x4, offset = 0x4, fixed_abs, tag = 'smem constant byte address 0x4 - core index']
  #allocation1 [shape = 'u32[144,128]{1,0:T(1,128)}', space=vmem, size = 0x12000, scoped, tag = 'internal scratch']
  %s0 = inlined_call_operand.vmem [shape: f32[2,8,128], index: 0, kind: input, shape index: {}]
  %s1 = inlined_call_operand.vmem [shape: f32[8,1], index: 1, kind: input, shape index: {}]
  %s2 = inlined_call_operand.vmem [shape: f32[8,1], index: 2, kind: input, shape index: {}]
  %s3 = inlined_call_operand.vmem [shape: f32[16,24], index: 3, kind: input, shape index: {}]
  %s4 = inlined_call_operand.vmem [shape: f32[16,1], index: 4, kind: input, shape index: {}]
  %s5 = inlined_call_operand.vmem [shape: f32[16,48], index: 5, kind: input, shape index: {}]
  %s6 = inlined_call_operand.vmem [shape: f32[16,1], index: 6, kind: input, shape index: {}]
  %s7 = inlined_call_operand.hbm [shape: f32[2,16,128], index: 7, kind: output, shape index: {}]
  %s8 = sld [smem:[#allocation0]]
  $region61: #{tpu_custom_call.1} parent=0
    _
  %s10 = ssub.s32 1, %s8
  %s11 = scalar_select 0, %s10, %s8
  $region1: #{tpu_custom_call.1} parent=0
    #allocation2 [shape = 'u8[16384]{0}', space=vmem, size = 0x4000, scoped, tag = 'output window, operand 0']
    #allocation3 [shape = 's32[2]{0}', space=sflag, size = 0x8, scoped, tag = 'scoped memory for tpu_custom_call.1']
    %12 = vsyncpa [#allocation3], 0
    %s13 = scalar_lea.sflag [#allocation3], 1
    %14 = vsyncpa %s13, 0
    loop: start=0, step=1, limit=4
    $region2: #{tpu_custom_call.1} parent=1 // loop_pre_header
      _
    $region3: #{tpu_custom_call.1} parent=1 // loop_header
      %s16 = sphi 0, %s20
      %p17 = scmp.ge.s32.totalorder %s16, 4
      %s26 = sphi 0, %s28
      %s29 = sphi 0, %s26
      %s30 = sphi 0, %s29
      %s46 = sphi 0, %s30
      %s50 = sphi 0, %s50
      %s52 = sphi 0, %s50
      %s53 = sphi 0, %s52
      %s67 = sphi 0, %s53
      %s71 = sphi 0, %s71
      %s73 = sphi 0, %s71
      %s74 = sphi 0, %s73
      %s88 = sphi 0, %s74
      %s92 = sphi 0, %s92
      %s94 = sphi 0, %s92
      %s95 = sphi 0, %s94
      %s109 = sphi 0, %s95
      %s113 = sphi 0, %s113
      %s115 = sphi 0, %s113
      %s116 = sphi 0, %s115
      %s130 = sphi 0, %s116
      %s134 = sphi 0, %s134
      %s136 = sphi 0, %s134
      %s137 = sphi 0, %s136
      %s151 = sphi 0, %s137
      %s155 = sphi 0, %s155
      %s157 = sphi 0, %s155
      %s158 = sphi 0, %s157
      %s172 = sphi 0, %s158
      %s178 = sphi 0, %s180
      %s181 = sphi 0, %s178
      %s182 = sphi 0, %s181
      %s198 = sphi 0, %s182
    $region4: #{tpu_custom_call.1} parent=1 // loop_header_branch
      %19 = sbr.rel (%p17) target = $region8
    $region5: #{tpu_custom_call.1} parent=1 // loop_body
      %s21 = ssub.s32 %s16, 1
      %s22 = ssub.s32 %s16, 2
      %s23 = sadd.s32 %s16, 1
      %s24 = ssub.s32 %s16, %s23
      %p25 = scmp.eq.s32.totalorder %s24, 0
      %s27 = sadd.s32 %s26, 1
      %s28 = scalar_select %p25, %s26, %s27
      %p31 = pneg %p25
      %p32 = scmp.eq.s32.totalorder %s16, 1
      %p33 = por %p31, %p32
      %p34 = scmp.ne.s32.totalorder %s26, %s29
      %p35 = scmp.eq.s32.totalorder %s16, 0
      %p36 = por %p34, %p35
      %p37 = scmp.ne.s32.totalorder %s26, %s29
      %p38 = scmp.eq.s32.totalorder %s21, 1
      %p39 = por %p37, %p38
      %p40 = scmp.ne.s32.totalorder %s29, %s30
      %p41 = scmp.eq.s32.totalorder %s21, 0
      %p42 = por %p40, %p41
      %p43 = scmp.ne.s32.totalorder %s29, %s30
      %p44 = scmp.eq.s32.totalorder %s22, 1
      %p45 = por %p43, %p44
      %p47 = scmp.ne.s32.totalorder %s30, %s46
      %p48 = scmp.eq.s32.totalorder %s22, 0
      %p49 = por %p47, %p48
      %s51 = sadd.s32 %s50, 1
      %p54 = scmp.eq.s32.totalorder %s16, 1
      %p55 = scmp.ne.s32.totalorder %s50, %s52
      %p56 = scmp.eq.s32.totalorder %s16, 0
      %p57 = por %p55, %p56
      %p58 = scmp.ne.s32.totalorder %s50, %s52
      %p59 = scmp.eq.s32.totalorder %s21, 1
      %p60 = por %p58, %p59
      %p61 = scmp.ne.s32.totalorder %s52, %s53
      %p62 = scmp.eq.s32.totalorder %s21, 0
      %p63 = por %p61, %p62
      %p64 = scmp.ne.s32.totalorder %s52, %s53
      %p65 = scmp.eq.s32.totalorder %s22, 1
      %p66 = por %p64, %p65
      %p68 = scmp.ne.s32.totalorder %s53, %s67
      %p69 = scmp.eq.s32.totalorder %s22, 0
      %p70 = por %p68, %p69
      %s72 = sadd.s32 %s71, 1
      %p75 = scmp.eq.s32.totalorder %s16, 1
      %p76 = scmp.ne.s32.totalorder %s71, %s73
      %p77 = scmp.eq.s32.totalorder %s16, 0
      %p78 = por %p76, %p77
      %p79 = scmp.ne.s32.totalorder %s71, %s73
      %p80 = scmp.eq.s32.totalorder %s21, 1
      %p81 = por %p79, %p80
      %p82 = scmp.ne.s32.totalorder %s73, %s74
      %p83 = scmp.eq.s32.totalorder %s21, 0
      %p84 = por %p82, %p83
      %p85 = scmp.ne.s32.totalorder %s73, %s74
      %p86 = scmp.eq.s32.totalorder %s22, 1
      %p87 = por %p85, %p86
      %p89 = scmp.ne.s32.totalorder %s74, %s88
      %p90 = scmp.eq.s32.totalorder %s22, 0
      %p91 = por %p89, %p90
      %s93 = sadd.s32 %s92, 1
      %p96 = scmp.eq.s32.totalorder %s16, 1
      %p97 = scmp.ne.s32.totalorder %s92, %s94
      %p98 = scmp.eq.s32.totalorder %s16, 0
      %p99 = por %p97, %p98
      %p100 = scmp.ne.s32.totalorder %s92, %s94
      %p101 = scmp.eq.s32.totalorder %s21, 1
      %p102 = por %p100, %p101
      %p103 = scmp.ne.s32.totalorder %s94, %s95
      %p104 = scmp.eq.s32.totalorder %s21, 0
      %p105 = por %p103, %p104
      %p106 = scmp.ne.s32.totalorder %s94, %s95
      %p107 = scmp.eq.s32.totalorder %s22, 1
      %p108 = por %p106, %p107
      %p110 = scmp.ne.s32.totalorder %s95, %s109
      %p111 = scmp.eq.s32.totalorder %s22, 0
      %p112 = por %p110, %p111
      %s114 = sadd.s32 %s113, 1
      %p117 = scmp.eq.s32.totalorder %s16, 1
      %p118 = scmp.ne.s32.totalorder %s113, %s115
      %p119 = scmp.eq.s32.totalorder %s16, 0
      %p120 = por %p118, %p119
      %p121 = scmp.ne.s32.totalorder %s113, %s115
      %p122 = scmp.eq.s32.totalorder %s21, 1
      %p123 = por %p121, %p122
      %p124 = scmp.ne.s32.totalorder %s115, %s116
      %p125 = scmp.eq.s32.totalorder %s21, 0
      %p126 = por %p124, %p125
      %p127 = scmp.ne.s32.totalorder %s115, %s116
      %p128 = scmp.eq.s32.totalorder %s22, 1
      %p129 = por %p127, %p128
      %p131 = scmp.ne.s32.totalorder %s116, %s130
      %p132 = scmp.eq.s32.totalorder %s22, 0
      %p133 = por %p131, %p132
      %s135 = sadd.s32 %s134, 1
      %p138 = scmp.eq.s32.totalorder %s16, 1
      %p139 = scmp.ne.s32.totalorder %s134, %s136
      %p140 = scmp.eq.s32.totalorder %s16, 0
      %p141 = por %p139, %p140
      %p142 = scmp.ne.s32.totalorder %s134, %s136
      %p143 = scmp.eq.s32.totalorder %s21, 1
      %p144 = por %p142, %p143
      %p145 = scmp.ne.s32.totalorder %s136, %s137
      %p146 = scmp.eq.s32.totalorder %s21, 0
      %p147 = por %p145, %p146
      %p148 = scmp.ne.s32.totalorder %s136, %s137
      %p149 = scmp.eq.s32.totalorder %s22, 1
      %p150 = por %p148, %p149
      %p152 = scmp.ne.s32.totalorder %s137, %s151
      %p153 = scmp.eq.s32.totalorder %s22, 0
      %p154 = por %p152, %p153
      %s156 = sadd.s32 %s155, 1
      %p159 = scmp.eq.s32.totalorder %s16, 1
      %p160 = scmp.ne.s32.totalorder %s155, %s157
      %p161 = scmp.eq.s32.totalorder %s16, 0
      %p162 = por %p160, %p161
      %p163 = scmp.ne.s32.totalorder %s155, %s157
      %p164 = scmp.eq.s32.totalorder %s21, 1
      %p165 = por %p163, %p164
      %p166 = scmp.ne.s32.totalorder %s157, %s158
      %p167 = scmp.eq.s32.totalorder %s21, 0
      %p168 = por %p166, %p167
      %p169 = scmp.ne.s32.totalorder %s157, %s158
      %p170 = scmp.eq.s32.totalorder %s22, 1
      %p171 = por %p169, %p170
      %p173 = scmp.ne.s32.totalorder %s158, %s172
      %p174 = scmp.eq.s32.totalorder %s22, 0
      %p175 = por %p173, %p174
      %s176 = ssub.s32 %s16, %s23
      %p177 = scmp.eq.s32.totalorder %s176, 0
      %s179 = sadd.s32 %s178, 1
      %s180 = scalar_select %p177, %s178, %s179
      %p183 = pneg %p177
      %p184 = scmp.eq.s32.totalorder %s16, 1
      %p185 = por %p183, %p184
      %p186 = scmp.ne.s32.totalorder %s178, %s181
      %p187 = scmp.eq.s32.totalorder %s16, 0
      %p188 = por %p186, %p187
      %p189 = scmp.ne.s32.totalorder %s178, %s181
      %p190 = scmp.eq.s32.totalorder %s21, 1
      %p191 = por %p189, %p190
      %p192 = scmp.ne.s32.totalorder %s181, %s182
      %p193 = scmp.eq.s32.totalorder %s21, 0
      %p194 = por %p192, %p193
      %p195 = scmp.ne.s32.totalorder %s181, %s182
      %p196 = scmp.eq.s32.totalorder %s22, 1
      %p197 = por %p195, %p196
      %p199 = scmp.ne.s32.totalorder %s182, %s198
      %p200 = scmp.eq.s32.totalorder %s22, 0
      %p201 = por %p199, %p200
      %p202 = scmp.le.s32.totalorder 1, %s16
      %p203 = scmp.lt.s32.totalorder %s16, 3
      %p204 = pnand %p202, %p203
      %p205 = pneg %p204
      // Predicated region
      $region9: #{tpu_custom_call.1} parent=5 // pred_check
        _
      $region10: #{tpu_custom_call.1} parent=5 // pred_check_branch
        %207 = sbr.rel (%p204) target = $region12
      $region11: #{tpu_custom_call.1} parent=5 // pred_region
        %s208 = ssub.s32 %s16, 1
        // Predicated region
        $region13: #{tpu_custom_call.1} parent=11 // pred_check
          %p209 = pneg %p63
        $region14: #{tpu_custom_call.1} parent=11 // pred_check_branch
          %211 = sbr.rel (%p209) target = $region16
        $region15: #{tpu_custom_call.1} parent=11 // pred_region
          _
        $region16: #{tpu_custom_call.1} parent=11 // pred_fallthru
          _
        // Predicated region
        $region17: #{tpu_custom_call.1} parent=11 // pred_check
          %p212 = pneg %p84
        $region18: #{tpu_custom_call.1} parent=11 // pred_check_branch
          %214 = sbr.rel (%p212) target = $region20
        $region19: #{tpu_custom_call.1} parent=11 // pred_region
          _
        $region20: #{tpu_custom_call.1} parent=11 // pred_fallthru
          _
        // Predicated region
        $region21: #{tpu_custom_call.1} parent=11 // pred_check
          %p215 = pneg %p105
        $region22: #{tpu_custom_call.1} parent=11 // pred_check_branch
          %217 = sbr.rel (%p215) target = $region24
        $region23: #{tpu_custom_call.1} parent=11 // pred_region
          _
        $region24: #{tpu_custom_call.1} parent=11 // pred_fallthru
          _
        // Predicated region
        $region25: #{tpu_custom_call.1} parent=11 // pred_check
          %p218 = pneg %p126
        $region26: #{tpu_custom_call.1} parent=11 // pred_check_branch
          %220 = sbr.rel (%p218) target = $region28
        $region27: #{tpu_custom_call.1} parent=11 // pred_region
          _
        $region28: #{tpu_custom_call.1} parent=11 // pred_fallthru
          _
        // Predicated region
        $region29: #{tpu_custom_call.1} parent=11 // pred_check
          %p221 = pneg %p147
        $region30: #{tpu_custom_call.1} parent=11 // pred_check_branch
          %223 = sbr.rel (%p221) target = $region32
        $region31: #{tpu_custom_call.1} parent=11 // pred_region
          _
        $region32: #{tpu_custom_call.1} parent=11 // pred_fallthru
          _
        // Predicated region
        $region33: #{tpu_custom_call.1} parent=11 // pred_check
          %p224 = pneg %p168
        $region34: #{tpu_custom_call.1} parent=11 // pred_check_branch
          %226 = sbr.rel (%p224) target = $region36
        $region35: #{tpu_custom_call.1} parent=11 // pred_region
          _
        $region36: #{tpu_custom_call.1} parent=11 // pred_fallthru
          _
      $region12: #{tpu_custom_call.1} parent=5 // pred_fallthru
        _
      %p227 = scmp.lt.s32.totalorder %s16, 2
      // Predicated region
      $region37: #{tpu_custom_call.1} parent=5 // pred_check
        %p228 = pneg %p227
      $region38: #{tpu_custom_call.1} parent=5 // pred_check_branch
        %230 = sbr.rel (%p228) target = $region40
      $region39: #{tpu_custom_call.1} parent=5 // pred_region
        // Predicated region
        $region41: #{tpu_custom_call.1} parent=39 // pred_check
          %p231 = pneg %p36
        $region42: #{tpu_custom_call.1} parent=39 // pred_check_branch
          %233 = sbr.rel (%p231) target = $region44
        $region43: #{tpu_custom_call.1} parent=39 // pred_region
          %p234 = scmp.lt.s32.totalorder %s16, 1
          %s235 = scalar_select %p234, %s16, 1
          %s236 = smul.addr %s235, 8
          %s237 = scalar_lea.vmem %s0, %s236
        $region44: #{tpu_custom_call.1} parent=39 // pred_fallthru
          _
      $region40: #{tpu_custom_call.1} parent=5 // pred_fallthru
        _
      %p238 = scmp.le.s32.totalorder 1, %s16
      %p239 = scmp.lt.s32.totalorder %s16, 3
      %p240 = pnand %p238, %p239
      %p241 = pneg %p240
      // Predicated region
      $region45: #{tpu_custom_call.1} parent=5 // pred_check
        _
      $region46: #{tpu_custom_call.1} parent=5 // pred_check_branch
        %243 = sbr.rel (%p240) target = $region48
      $region47: #{tpu_custom_call.1} parent=5 // pred_region
        %s244 = ssub.s32 %s16, 1
        %p245 = scmp.lt.s32.totalorder %s21, 1
        %s246 = scalar_select %p245, %s21, 1
        %s247 = smul.addr %s246, 8
        %s248 = scalar_lea.vmem %s0, %s247
        %p249 = pneg %p42
        %p250 = pneg %p39
        %p251 = pneg %p63
        %p252 = pneg %p60
        %p253 = pneg %p84
        %p254 = pneg %p81
        %p255 = pneg %p105
        %p256 = pneg %p102
        %p257 = pneg %p126
        %p258 = pneg %p123
        %p259 = pneg %p147
        %p260 = pneg %p144
        %p261 = pneg %p168
        %p262 = pneg %p165
        %p263 = pneg %p194
        %p264 = pneg %p191
        %s265 = sand.u32 %s181, 1
        %s266 = scalar_lea.sflag [#allocation3], %s265
        %s267 = sand.u32 %s181, 1
        %s268 = smul.addr %s267, 16
        %s269 = scalar_lea.vmem [#allocation2], %s268
        %p270 = scmp.lt.s32.totalorder %s21, 1
        %s271 = scalar_select %p270, %s21, 1
        %s272 = smul.addr %s271, 8
        %s273 = scalar_lea.vmem %s0, %s272
        %v274 = vlaneseq
        %v275 = vand.u32 %v274, 127
        %vm276 = vcmp.ge.s32.totalorder %v275, 1
        %vm277 = vcmp.lt.s32.totalorder %v275, 127
        %v278 = vld [vmem:[%s1] sm:$0xff]
        %v279 = vld [vmem:[%s2] sm:$0xff]
        %v280 = vld [vmem:[%s3] sm:$0xff]
        %v281 = vld [vmem:[%s3 + $0x8] sm:$0xff]
        %v282 = vld [vmem:[%s4] sm:$0xff]
        %v283 = vld [vmem:[%s4 + $0x8] sm:$0xff]
        %v284 = vld [vmem:[%s5] sm:$0xff]
        %v285 = vld [vmem:[%s5 + $0x8] sm:$0xff]
        %v286 = vld [vmem:[%s6] sm:$0xff]
        %v287 = vld [vmem:[%s6 + $0x8] sm:$0xff]
        %v288 = vld [vmem:[%s273] sm:$0xff]
        %290 = vset.pattern.permute.xlu0 0
        %291 = vperm.xlu0 %290, %v278
        %v292 = vpop.permute.xlu0 %291
        %v294 = vmul.f32 %v288, %v292
        %296 = vset.pattern.permute.xlu0 0
        %297 = vperm.xlu0 %296, %v279
        %v298 = vpop.permute.xlu0 %297
        %v300 = vadd.f32 %v294, %v298
        %v301 = vmul.f32 %v300, 0.5
        %v302 = vmul.f32 %v300, 0.70710677
        %v303 = verf.f32.pop %v302
        %v304 = vadd.f32 %v303, 1.0
        %v305 = vmul.f32 %v301, %v304
        %306 = vrot.lane.b32.xlu0 %v305, 1
        %v307 = vpop.permute.xlu0 %306
        %v308 = vsel %vm276, 1, 0
        %vm309 = vcmp.eq.s32.totalorder %v308, 1
        %v310 = vsel %vm309, %v307, 0.0
        %311 = vrot.lane.b32.xlu0 %v305, 127
        %v312 = vpop.permute.xlu0 %311
        %v313 = vsel %vm277, 1, 0
        %vm314 = vcmp.eq.s32.totalorder %v313, 1
        %v315 = vsel %vm314, %v312, 0.0
        %317 = vset.pattern.permute.xlu0 0
        %318 = vperm.xlu0 %317, %v282
        %v319 = vpop.permute.xlu0 %318
        %322 = vset.pattern.permute.xlu0 0
        %323 = vperm.xlu0 %322, %v283
        %v324 = vpop.permute.xlu0 %323
        %vm326 = vcmask 195584
        %v328 = vsel %vm326, %v280, 0
        %v331 = vsel %vm326, %v281, 0
        %333 = vmatprep.subr.mxu0 0.0
        %334 = vmatpush1.msra.mxu0 0.0
        %335 = vmatprep.subr.mxu0 0.0
        %336 = vmatpush1.msra.mxu0 0.0
        %337 = vmatprep.subr.mxu0 0.0
        %338 = vmatpush1.msra.mxu0 0.0
        %339 = vmatprep.subr.mxu0 0.0
        %340 = vmatpush1.msra.mxu0 0.0
        %341 = vmatprep.subr.mxu0 0.0
        %342 = vmatpush1.msra.mxu0 0.0
        %343 = vmatprep.subr.mxu0 0.0
        %344 = vmatpush1.msra.mxu0 0.0
        %345 = vmatprep.subr.mxu0 0.0
        %346 = vmatpush1.msra.mxu0 0.0
        %347 = vmatprep.subr.mxu0 0.0
        %348 = vmatpush1.msra.mxu0 0.0
        %349 = vmatprep.subr.mxu0 0.0
        %350 = vmatpush1.msra.mxu0 0.0
        %351 = vmatprep.subr.mxu0 0.0
        %352 = vmatpush1.msra.mxu0 0.0
        %353 = vmatprep.subr.mxu0 0.0
        %354 = vmatpush1.msra.mxu0 0.0
        %355 = vmatprep.subr.mxu0 0.0
        %356 = vmatpush1.msra.mxu0 0.0
        %357 = vmatprep.subr.mxu0 0.0
        %358 = vmatpush1.msra.mxu0 0.0
        %359 = vmatprep.subr.mxu0 0.0
        %360 = vmatpush1.msra.mxu0 %v315
        %361 = vmatprep.subr.mxu0 0.0
        %362 = vmatpush1.msra.mxu0 %v305
        %363 = vmatprep.subr.mxu0 0.0
        %364 = vmatpush1.msra.mxu0 %v310
        %365 = vmatprep.subr.mxu0 0.0
        %366 = vmatpush2.msra.mxu0 0.0
        %367 = vmatprep.subr.mxu0 0.0
        %368 = vmatpush2.msra.mxu0 0.0
        %369 = vmatprep.subr.mxu0 0.0
        %370 = vmatpush2.msra.mxu0 0.0
        %371 = vmatprep.subr.mxu0 0.0
        %372 = vmatpush2.msra.mxu0 0.0
        %373 = vmatprep.subr.mxu0 0.0
        %374 = vmatpush2.msra.mxu0 0.0
        %375 = vmatprep.subr.mxu0 0.0
        %376 = vmatpush2.msra.mxu0 0.0
        %377 = vmatprep.subr.mxu0 0.0
        %378 = vmatpush2.msra.mxu0 0.0
        %379 = vmatprep.subr.mxu0 0.0
        %380 = vmatpush2.msra.mxu0 0.0
        %381 = vmatprep.subr.mxu0 0.0
        %382 = vmatpush2.msra.mxu0 0.0
        %383 = vmatprep.subr.mxu0 0.0
        %384 = vmatpush2.msra.mxu0 0.0
        %385 = vmatprep.subr.mxu0 0.0
        %386 = vmatpush2.msra.mxu0 0.0
        %387 = vmatprep.subr.mxu0 0.0
        %388 = vmatpush2.msra.mxu0 0.0
        %389 = vmatprep.subr.mxu0 0.0
        %390 = vmatpush2.msra.mxu0 0.0
        %391 = vmatprep.subr.mxu0 0.0
        %392 = vmatpush2.msra.mxu0 0.0
        %393 = vmatprep.subr.mxu0 0.0
        %394 = vmatpush2.msra.mxu0 0.0
        %395 = vmatprep.subr.mxu0 0.0
        %396 = vmatpush2.msra.mxu0 0.0
        %397 = vmatprep.mubr.f32.mxu0 0.0
        %398 = vmatmul.mubr.f32.gmra.mxu0 %v328
        %v399 = vpop.f32.mrf.mxu0
        %v400 = vadd.f32 %v319, %v399
        %v401 = vpop.f32.mrf.mxu0
        %402 = vmatprep.mubr.f32.mxu0 0.0
        %403 = vmatmul.mubr.f32.gmra.mxu0 %v331
        %v404 = vpop.f32.mrf.mxu0
        %v405 = vadd.f32 %v324, %v404
        %v406 = vpop.f32.mrf.mxu0
        %407 = vdwg.mxu0
        %v408 = vmul.f32 %v400, 0.5
        %v409 = vmul.f32 %v405, 0.5
        %v410 = vmul.f32 %v400, 0.70710677
        %v411 = vmul.f32 %v405, 0.70710677
        %v412 = verf.f32.pop %v410
        %v413 = verf.f32.pop %v411
        %v414 = vadd.f32 %v412, 1.0
        %v415 = vadd.f32 %v413, 1.0
        %v416 = vmul.f32 %v408, %v414
        %v417 = vmul.f32 %v409, %v415
        %418 = vrot.lane.b32.xlu0 %v416, 1
        %v419 = vpop.permute.xlu0 %418
        %420 = vrot.lane.b32.xlu0 %v417, 1
        %v421 = vpop.permute.xlu0 %420
        %v422 = vsel %vm309, %v419, 0.0
        %v423 = vsel %vm309, %v421, 0.0
        %424 = vrot.lane.b32.xlu0 %v416, 127
        %v425 = vpop.permute.xlu0 %424
        %426 = vrot.lane.b32.xlu0 %v417, 127
        %v427 = vpop.permute.xlu0 %426
        %v428 = vsel %vm314, %v425, 0.0
        %v429 = vsel %vm314, %v427, 0.0
        %431 = vset.pattern.permute.xlu0 0
        %432 = vperm.xlu0 %431, %v286
        %v433 = vpop.permute.xlu0 %432
        %436 = vset.pattern.permute.xlu0 0
        %437 = vperm.xlu0 %436, %v287
        %v438 = vpop.permute.xlu0 %437
        %vm440 = vcmask 392192
        %v442 = vsel %vm440, %v284, 0
        %v445 = vsel %vm440, %v285, 0
        %447 = vmatprep.subr.mxu0 0.0
        %448 = vmatpush1.msra.mxu0 0.0
        %449 = vmatprep.subr.mxu0 0.0
        %450 = vmatpush1.msra.mxu0 0.0
        %451 = vmatprep.subr.mxu0 0.0
        %452 = vmatpush1.msra.mxu0 0.0
        %453 = vmatprep.subr.mxu0 0.0
        %454 = vmatpush1.msra.mxu0 0.0
        %455 = vmatprep.subr.mxu0 0.0
        %456 = vmatpush1.msra.mxu0 0.0
        %457 = vmatprep.subr.mxu0 0.0
        %458 = vmatpush1.msra.mxu0 0.0
        %459 = vmatprep.subr.mxu0 0.0
        %460 = vmatpush1.msra.mxu0 0.0
        %461 = vmatprep.subr.mxu0 0.0
        %462 = vmatpush1.msra.mxu0 0.0
        %463 = vmatprep.subr.mxu0 0.0
        %464 = vmatpush1.msra.mxu0 0.0
        %465 = vmatprep.subr.mxu0 0.0
        %466 = vmatpush1.msra.mxu0 0.0
        %467 = vmatprep.subr.mxu0 0.0
        %468 = vmatpush1.msra.mxu0 %v429
        %469 = vmatprep.subr.mxu0 0.0
        %470 = vmatpush1.msra.mxu0 %v428
        %471 = vmatprep.subr.mxu0 0.0
        %472 = vmatpush1.msra.mxu0 %v417
        %473 = vmatprep.subr.mxu0 0.0
        %474 = vmatpush1.msra.mxu0 %v416
        %475 = vmatprep.subr.mxu0 0.0
        %476 = vmatpush1.msra.mxu0 %v423
        %477 = vmatprep.subr.mxu0 0.0
        %478 = vmatpush1.msra.mxu0 %v422
        %479 = vmatprep.subr.mxu0 0.0
        %480 = vmatpush2.msra.mxu0 0.0
        %481 = vmatprep.subr.mxu0 0.0
        %482 = vmatpush2.msra.mxu0 0.0
        %483 = vmatprep.subr.mxu0 0.0
        %484 = vmatpush2.msra.mxu0 0.0
        %485 = vmatprep.subr.mxu0 0.0
        %486 = vmatpush2.msra.mxu0 0.0
        %487 = vmatprep.subr.mxu0 0.0
        %488 = vmatpush2.msra.mxu0 0.0
        %489 = vmatprep.subr.mxu0 0.0
        %490 = vmatpush2.msra.mxu0 0.0
        %491 = vmatprep.subr.mxu0 0.0
        %492 = vmatpush2.msra.mxu0 0.0
        %493 = vmatprep.subr.mxu0 0.0
        %494 = vmatpush2.msra.mxu0 0.0
        %495 = vmatprep.subr.mxu0 0.0
        %496 = vmatpush2.msra.mxu0 0.0
        %497 = vmatprep.subr.mxu0 0.0
        %498 = vmatpush2.msra.mxu0 0.0
        %499 = vmatprep.subr.mxu0 0.0
        %500 = vmatpush2.msra.mxu0 0.0
        %501 = vmatprep.subr.mxu0 0.0
        %502 = vmatpush2.msra.mxu0 0.0
        %503 = vmatprep.subr.mxu0 0.0
        %504 = vmatpush2.msra.mxu0 0.0
        %505 = vmatprep.subr.mxu0 0.0
        %506 = vmatpush2.msra.mxu0 0.0
        %507 = vmatprep.subr.mxu0 0.0
        %508 = vmatpush2.msra.mxu0 0.0
        %509 = vmatprep.subr.mxu0 0.0
        %510 = vmatpush2.msra.mxu0 0.0
        %511 = vmatprep.mubr.f32.mxu0 0.0
        %512 = vmatmul.mubr.f32.gmra.mxu0 %v442
        %v513 = vpop.f32.mrf.mxu0
        %v514 = vadd.f32 %v433, %v513
        %v515 = vpop.f32.mrf.mxu0
        %516 = vmatprep.mubr.f32.mxu0 0.0
        %517 = vmatmul.mubr.f32.gmra.mxu0 %v445
        %v518 = vpop.f32.mrf.mxu0
        %v519 = vadd.f32 %v438, %v518
        %v520 = vpop.f32.mrf.mxu0
        %521 = vdwg.mxu0
        %522 = vst [vmem:[%s269] sm:$0xff] %v514
        %523 = vst [vmem:[%s269 + $0x8] sm:$0xff] %v519
        %s524 = sand.u32 %s181, 1
        %s525 = scalar_lea.sflag [#allocation3], %s524
        %s526 = sand.u32 %s181, 1
        %s527 = smul.addr %s526, 16
        %s528 = scalar_lea.vmem [#allocation2], %s527
        // Predicated region
        $region49: #{tpu_custom_call.1} parent=47 // pred_check
          %p529 = pneg %p191
        $region50: #{tpu_custom_call.1} parent=47 // pred_check_branch
          %531 = sbr.rel (%p529) target = $region52
        $region51: #{tpu_custom_call.1} parent=47 // pred_region
          %s533 = ssub.s32 256, 256
          %534 = vsyncadd %s525, %s533
          %s535 = smul.addr %s21, 2
          %s536 = smul.addr %s535, 128
          %s537 = scalar_lea.hbm %s7, %s536
          %s538 = sshll.u32 %s528, 4
          %s539 = int_to_ptr.vmem [resolvable:$true] %s538
          %544 = dma.vmem_to_hbm [thread:$0]  %s539, 256, %s537, %s525, 128, 128, 8
        $region52: #{tpu_custom_call.1} parent=47 // pred_fallthru
          _
      $region48: #{tpu_custom_call.1} parent=5 // pred_fallthru
        _
      %p545 = scmp.le.s32.totalorder 2, %s16
      // Predicated region
      $region53: #{tpu_custom_call.1} parent=5 // pred_check
        %p546 = pneg %p545
      $region54: #{tpu_custom_call.1} parent=5 // pred_check_branch
        %548 = sbr.rel (%p546) target = $region56
      $region55: #{tpu_custom_call.1} parent=5 // pred_region
        %s549 = ssub.s32 %s16, 2
        // Predicated region
        $region57: #{tpu_custom_call.1} parent=55 // pred_check
          %p550 = pneg %p197
        $region58: #{tpu_custom_call.1} parent=55 // pred_check_branch
          %552 = sbr.rel (%p550) target = $region60
        $region59: #{tpu_custom_call.1} parent=55 // pred_region
          %s553 = sand.u32 %s182, 1
          %s554 = scalar_lea.sflag [#allocation3], %s553
          %s555 = sand.u32 %s182, 1
          %s556 = smul.addr %s555, 16
          %s557 = scalar_lea.vmem [#allocation2], %s556
          %558 = dma.done %s554, 256
        $region60: #{tpu_custom_call.1} parent=55 // pred_fallthru
          _
      $region56: #{tpu_custom_call.1} parent=5 // pred_fallthru
        _
    $region6: #{tpu_custom_call.1} parent=1 // loop_footer
      %s20 = sadd.s32 1, %s16
    $region7: #{tpu_custom_call.1} parent=1 // loop_footer_branch
      %15 = sbr.rel target = $region3
    $region8: #{tpu_custom_call.1} parent=1 // loop_exit
      _
    %559 = vsyncpa [#allocation3], 1
    %s560 = scalar_lea.sflag [#allocation3], 1
    %561 = vsyncpa %s560, 1

</llo_original>
